<compile_context>
chip_gen: v5e
topology: v5e:2x2
jax: 0.10.0
libtpu: 0.0.40
codegen_flags: <defaults>
</compile_context>

<pallas_src>
import functools

import jax
import jax.numpy as jnp
from jax import lax
from jax.experimental import pallas as pl
from jax.experimental.pallas import tpu as pltpu


def _round_up(x, m):
    return (x + m - 1) // m * m


def _fused_kernel(x_ref, w1_ref, b1_ref, w2_ref, b2_ref, mask_ref, alpha_ref,
                  o_ref, *, wc, ext, tl):
    """Fused conv1(3x3)+bias+PReLU -> conv4(3x3)+bias for one (batch, lane-tile).

    Layout: channels on sublanes, flattened padded canvas (hc*wc) on lanes.

    x_ref:     (1, cin_p, lext)     VMEM  zero-padded canvas, lane-extended by
                                          2*ext each side (resident per batch)
    w1_ref:    (nf_p, 9*cin_p)      VMEM  conv1 weights, taps stacked along K
    b1_ref:    (nf_p, 1)            VMEM
    w2_ref:    (cout_p, 9*nf_p)     VMEM  conv4 weights, taps stacked along K
    b2_ref:    (cout_p, 1)          VMEM
    mask_ref:  (1, L_pad + 2*ext)   VMEM  1.0 on canvas interior, 0.0 elsewhere
                                          (index m <-> canvas position m - ext)
    alpha_ref: (1,)                 SMEM  PReLU slope
    o_ref:     (1, cout_p, tl)      VMEM  conv4 output for this lane tile
    """
    j = pl.program_id(1)
    tw = tl + 2 * ext                       # y1 lane width (tile + conv4 halo)
    # Tap k=(kh,kw) reads canvas position p + (kh-1)*wc + (kw-1).
    offsets = [r * wc + c for r in (-1, 0, 1) for c in (-1, 0, 1)]

    ts = pl.multiple_of(j * tl, 128)        # tile start (canvas position)

    # One dynamic windowed load covering this tile plus both conv halos:
    # canvas positions [ts - 2*ext, ts + tl + 2*ext)  (extended index ts..).
    xw = x_ref[0, :, pl.ds(ts, tl + 4 * ext)]           # (cin_p, tl + 4*ext)

    # ---- conv1: one K = 9*cin_p matmul over the 9 statically-shifted views. ----
    xcat = jnp.concatenate(
        [xw[:, ext + off: ext + off + tw] for off in offsets], axis=0)
    y1 = jnp.dot(w1_ref[...], xcat, preferred_element_type=jnp.float32)
    y1 = y1 + b1_ref[...]                                # (nf_p, tw) + (nf_p, 1)
    alpha = alpha_ref[0]
    y1 = jnp.where(y1 >= 0.0, y1, alpha * y1)            # PReLU
    # Re-zero the pad ring / out-of-canvas lanes so conv4 sees zero padding.
    y1 = y1 * mask_ref[:, pl.ds(ts, tw)]
    y1 = y1.astype(w2_ref.dtype)

    # ---- conv4: 9 taps as static slices of the register value; no activation. ----
    hcat = jnp.concatenate(
        [y1[:, ext + off: ext + off + tl] for off in offsets], axis=0)
    y2 = jnp.dot(w2_ref[...], hcat, preferred_element_type=jnp.float32)
    y2 = y2 + b2_ref[...]                                # (cout_p, tl) + (cout_p, 1)
    o_ref[0] = y2.astype(o_ref.dtype)


def encoding_block_end_forward(x_nchw, params, *,
                               compute_dtype=jnp.float32, tile_lanes=2048):
    """PyTorch-equivalent forward. Input/output NCHW."""
    f32 = jnp.float32
    w1, b1 = params["w1"], params["b1"]      # (nf, cin, 3, 3), (nf,)  OIHW
    w2, b2 = params["w2"], params["b2"]      # (cin, nf, 3, 3), (cin,)
    alpha = params["prelu_alpha"]

    n, cin, h, w = x_nchw.shape
    nf = w1.shape[0]
    hc, wc = h + 2, w + 2                    # canvas = image + zero pad ring
    L = hc * wc                              # flattened canvas length
    ext = wc + 1                             # halo so all 9 taps stay in-bounds

    cin_p = _round_up(cin, 8)                # sublane-tile aligned channel counts
    nf_p = _round_up(nf, 8)
    cout_p = _round_up(cin, 8)               # conv4 output channels padded too

    tl = min(int(tile_lanes), _round_up(L, 128))   # lane tile, multiple of 128
    nt = -(-L // tl)                         # number of lane tiles
    L_pad = nt * tl                          # padded canvas length (mult of 128)
    lext = L_pad + 4 * ext                   # canvas with 2*ext extension per side

    # One zero-padded canvas per batch element (channels padded, flat spatial
    # lane-extended). No 9x shifted copies in HBM; taps are formed in-kernel.
    xc = jnp.pad(x_nchw.astype(compute_dtype),
                 ((0, 0), (0, cin_p - cin), (1, 1), (1, 1)))
    xc = xc.reshape(n, cin_p, L)
    xc = jnp.pad(xc, ((0, 0), (0, 0), (2 * ext, L_pad - L + 2 * ext)))

    # Weights OIHW -> (O, kh, kw, I) -> (O, 9*I); taps stacked along K in the
    # same (kh outer, kw inner, channel) order as the in-kernel concat.
    def pack_w(wt, in_p, out_p):
        o, i = wt.shape[0], wt.shape[1]
        wt = jnp.pad(wt.astype(compute_dtype),
                     ((0, out_p - o), (0, in_p - i), (0, 0), (0, 0)))
        return jnp.transpose(wt, (0, 2, 3, 1)).reshape(out_p, 9 * in_p)

    w1cat = pack_w(w1, cin_p, nf_p)                          # (nf_p, 9*cin_p)
    w2cat = pack_w(w2, nf_p, cout_p)                         # (cout_p, 9*nf_p)
    b1c = jnp.pad(b1.astype(f32), (0, nf_p - nf)).reshape(nf_p, 1)
    b2c = jnp.pad(b2.astype(f32), (0, cout_p - cin)).reshape(cout_p, 1)

    # Interior mask over canvas positions [-ext, L_pad + ext): 1.0 on the
    # h x w interior, 0.0 on the pad ring / extension.
    mask = jnp.pad(jnp.ones((h, w), f32), ((1, 1), (1, 1))).reshape(1, L)
    mask = jnp.pad(mask, ((0, 0), (ext, L_pad - L + ext)))   # (1, L_pad + 2*ext)
    alpha_arr = jnp.reshape(jnp.asarray(alpha, f32), (1,))

    kernel = functools.partial(_fused_kernel, wc=wc, ext=ext, tl=tl)
    out_canvas = pl.pallas_call(
        kernel,
        out_shape=jax.ShapeDtypeStruct((n, cout_p, L_pad), f32),
        grid=(n, nt),
        in_specs=[
            # Canvas block is constant across the lane-tile axis -> DMA'd once
            # per batch element, reused for all tiles of that element.
            pl.BlockSpec((1, cin_p, lext), lambda i, j: (i, 0, 0)),
            pl.BlockSpec((nf_p, 9 * cin_p), lambda i, j: (0, 0)),
            pl.BlockSpec((nf_p, 1), lambda i, j: (0, 0)),
            pl.BlockSpec((cout_p, 9 * nf_p), lambda i, j: (0, 0)),
            pl.BlockSpec((cout_p, 1), lambda i, j: (0, 0)),
            pl.BlockSpec((1, L_pad + 2 * ext), lambda i, j: (0, 0)),
            pl.BlockSpec(memory_space=pltpu.MemorySpace.SMEM),
        ],
        out_specs=pl.BlockSpec((1, cout_p, tl), lambda i, j: (i, 0, j)),
        compiler_params=pltpu.CompilerParams(
            dimension_semantics=("parallel", "parallel"),
            vmem_limit_bytes=48 * 1024 * 1024),
    )(xc, w1cat, b1c, w2cat, b2c, mask, alpha_arr)

    # Crop lane padding, padded channels, and the pad ring. Pure layout glue.
    out = out_canvas[:, :cin, :L].reshape(n, cin, hc, wc)[:, :, 1:h + 1, 1:w + 1]
    return out.astype(x_nchw.dtype)


# ---------------------------------------------------------------------------
# Deterministic parameter init (mirrors module __init__ / reset_parameters).
# ---------------------------------------------------------------------------
def init_params(key, c_in=4, n_feat=8):
    k1, k2, k3, k4 = jax.random.split(key, 4)
    fan_in1, fan_out1 = c_in * 9, n_feat * 9
    fan_in2, fan_out2 = n_feat * 9, c_in * 9
    std1 = (2.0 / (fan_in1 + fan_out1)) ** 0.5   # xavier_normal_
    std2 = (2.0 / (fan_in2 + fan_out2)) ** 0.5
    bnd1 = 1.0 / (fan_in1 ** 0.5)                # torch default conv bias init
    bnd2 = 1.0 / (fan_in2 ** 0.5)
    return {
        # weights stored OIHW (Cout, Cin, kh, kw) like PyTorch
        "w1": std1 * jax.random.normal(k1, (n_feat, c_in, 3, 3), jnp.float32),
        "b1": jax.random.uniform(k2, (n_feat,), jnp.float32, -bnd1, bnd1),
        "w2": std2 * jax.random.normal(k3, (c_in, n_feat, 3, 3), jnp.float32),
        "b2": jax.random.uniform(k4, (c_in,), jnp.float32, -bnd2, bnd2),
        "prelu_alpha": 0.25,                     # torch.nn.PReLU() default
    }


# ---------------------------------------------------------------------------
# Pure-JAX reference for verification.
# ---------------------------------------------------------------------------
def _ref_conv(x_nchw, w_oihw, b):
    y = lax.conv_general_dilated(
        x_nchw, w_oihw, window_strides=(1, 1), padding="SAME",
        dimension_numbers=("NCHW", "OIHW", "NCHW"))
    return y + b[None, :, None, None]


def ref_forward(x_nchw, params):
    y = _ref_conv(x_nchw, params["w1"], params["b1"])
    y = jnp.where(y >= 0.0, y, params["prelu_alpha"] * y)
    return _ref_conv(y, params["w2"], params["b2"])


if __name__ == "__main__":
    N, C_IN, N_FEAT, H, W = 2, 4, 8, 16, 16

    key = jax.random.PRNGKey(0)
    kx, kp = jax.random.split(key)
    x = jax.random.normal(kx, (N, C_IN, H, W), jnp.float32)   # NCHW like torch
    params = init_params(kp, c_in=C_IN, n_feat=N_FEAT)

    out = jax.jit(encoding_block_end_forward)(x, params)
    out = jax.block_until_ready(out)

    ref = jax.block_until_ready(ref_forward(x, params))
    assert out.shape == (N, C_IN, H, W)
    assert jnp.allclose(out, ref, atol=1e-4, rtol=1e-4), "mismatch vs reference"

    print("KERNEL_OK")
</pallas_src>

<mosaic_0001>
module attributes {stable_mosaic.version = 11 : i64} {
  func.func @_fused_kernel(%arg0: i32, %arg1: i32, %arg2: memref<1x8x460xf32, #tpu.memory_space<vmem>>, %arg3: memref<8x72xf32, #tpu.memory_space<vmem>>, %arg4: memref<8x1xf32, #tpu.memory_space<vmem>>, %arg5: memref<8x72xf32, #tpu.memory_space<vmem>>, %arg6: memref<8x1xf32, #tpu.memory_space<vmem>>, %arg7: memref<1x422xf32, #tpu.memory_space<vmem>>, %arg8: memref<1xf32, #tpu.memory_space<smem>>, %arg9: memref<1x8x384xf32, #tpu.memory_space<vmem>>) attributes {dimension_semantics = [#tpu.dimension_semantics<parallel>, #tpu.dimension_semantics<parallel>], iteration_bounds = array<i64: 2, 1>, scalar_prefetch = 0 : i64, scratch_operands = 0 : i64, tpu.core_type = #tpu.core_type<tc>, window_params = [{transform_indices = @transform_0, window_bounds = array<i64: 1, 8, 460>}, {pipeline_mode = #tpu.pipeline_mode<synchronous>, transform_indices = @transform_1, window_bounds = array<i64: 8, 72>}, {pipeline_mode = #tpu.pipeline_mode<synchronous>, transform_indices = @transform_2, window_bounds = array<i64: 8, 1>}, {pipeline_mode = #tpu.pipeline_mode<synchronous>, transform_indices = @transform_3, window_bounds = array<i64: 8, 72>}, {pipeline_mode = #tpu.pipeline_mode<synchronous>, transform_indices = @transform_4, window_bounds = array<i64: 8, 1>}, {pipeline_mode = #tpu.pipeline_mode<synchronous>, transform_indices = @transform_5, window_bounds = array<i64: 1, 422>}, {transform_indices = @transform_6, window_bounds = array<i64: 1>}, {transform_indices = @transform_7, window_bounds = array<i64: 1, 8, 384>}]} {
    %c384_i32 = arith.constant 384 : i32
    %0 = arith.muli %arg1, %c384_i32 : i32
    %1 = tpu.assume_multiple %0, 128 : i32
    %c0 = arith.constant 0 : index
    %c0_0 = arith.constant 0 : index
    %2 = arith.index_cast %1 : i32 to index
    %3 = vector.load %arg2[%c0, %c0_0, %2] : memref<1x8x460xf32, #tpu.memory_space<vmem>>, vector<1x8x460xf32>
    %4 = vector.shape_cast %3 : vector<1x8x460xf32> to vector<8x460xf32>
    %5 = vector.extract_strided_slice %4 {offsets = [0, 0], sizes = [8, 422], strides = [1, 1]} : vector<8x460xf32> to vector<8x422xf32>
    %6 = vector.extract_strided_slice %4 {offsets = [0, 1], sizes = [8, 422], strides = [1, 1]} : vector<8x460xf32> to vector<8x422xf32>
    %7 = vector.extract_strided_slice %4 {offsets = [0, 2], sizes = [8, 422], strides = [1, 1]} : vector<8x460xf32> to vector<8x422xf32>
    %8 = vector.extract_strided_slice %4 {offsets = [0, 18], sizes = [8, 422], strides = [1, 1]} : vector<8x460xf32> to vector<8x422xf32>
    %9 = vector.extract_strided_slice %4 {offsets = [0, 19], sizes = [8, 422], strides = [1, 1]} : vector<8x460xf32> to vector<8x422xf32>
    %10 = vector.extract_strided_slice %4 {offsets = [0, 20], sizes = [8, 422], strides = [1, 1]} : vector<8x460xf32> to vector<8x422xf32>
    %11 = vector.extract_strided_slice %4 {offsets = [0, 36], sizes = [8, 422], strides = [1, 1]} : vector<8x460xf32> to vector<8x422xf32>
    %12 = vector.extract_strided_slice %4 {offsets = [0, 37], sizes = [8, 422], strides = [1, 1]} : vector<8x460xf32> to vector<8x422xf32>
    %13 = vector.extract_strided_slice %4 {offsets = [0, 38], sizes = [8, 422], strides = [1, 1]} : vector<8x460xf32> to vector<8x422xf32>
    %14 = tpu.concatenate %5, %6, %7, %8, %9, %10, %11, %12, %13 in 0 : vector<8x422xf32>, vector<8x422xf32>, vector<8x422xf32>, vector<8x422xf32>, vector<8x422xf32>, vector<8x422xf32>, vector<8x422xf32>, vector<8x422xf32>, vector<8x422xf32> -> vector<72x422xf32>
    %c0_1 = arith.constant 0 : index
    %c0_2 = arith.constant 0 : index
    %15 = vector.load %arg3[%c0_1, %c0_2] : memref<8x72xf32, #tpu.memory_space<vmem>>, vector<8x72xf32>
    %cst = arith.constant dense<0.000000e+00> : vector<8x422xf32>
    %16 = tpu.matmul %15, %14, %cst {dimension_numbers = #tpu.dot_dimension_numbers<[1], [0], [0], [1], [0, 0, 1, 1], [], []>} : vector<8x72xf32>, vector<72x422xf32>, vector<8x422xf32> -> vector<8x422xf32>
    %c0_3 = arith.constant 0 : index
    %c0_4 = arith.constant 0 : index
    %17 = vector.load %arg4[%c0_3, %c0_4] : memref<8x1xf32, #tpu.memory_space<vmem>>, vector<8x1xf32>
    %18 = vector.broadcast %17 : vector<8x1xf32> to vector<8x422xf32>
    %19 = arith.addf %16, %18 : vector<8x422xf32>
    %c0_5 = arith.constant 0 : index
    %20 = memref.load %arg8[%c0_5] : memref<1xf32, #tpu.memory_space<smem>>
    %cst_6 = arith.constant 0.000000e+00 : f32
    %21 = vector.broadcast %cst_6 : f32 to vector<8x422xf32>
    %22 = arith.cmpf oge, %19, %21 : vector<8x422xf32>
    %23 = vector.broadcast %20 : f32 to vector<8x422xf32>
    %24 = arith.mulf %23, %19 : vector<8x422xf32>
    %25 = arith.select %22, %19, %24 : vector<8x422xi1>, vector<8x422xf32>
    %c0_7 = arith.constant 0 : index
    %26 = arith.index_cast %1 : i32 to index
    %27 = vector.load %arg7[%c0_7, %26] : memref<1x422xf32, #tpu.memory_space<vmem>>, vector<1x422xf32>
    %28 = vector.broadcast %27 : vector<1x422xf32> to vector<8x422xf32>
    %29 = arith.mulf %25, %28 : vector<8x422xf32>
    %30 = vector.extract_strided_slice %29 {offsets = [0, 0], sizes = [8, 384], strides = [1, 1]} : vector<8x422xf32> to vector<8x384xf32>
    %31 = vector.extract_strided_slice %29 {offsets = [0, 1], sizes = [8, 384], strides = [1, 1]} : vector<8x422xf32> to vector<8x384xf32>
    %32 = vector.extract_strided_slice %29 {offsets = [0, 2], sizes = [8, 384], strides = [1, 1]} : vector<8x422xf32> to vector<8x384xf32>
    %33 = vector.extract_strided_slice %29 {offsets = [0, 18], sizes = [8, 384], strides = [1, 1]} : vector<8x422xf32> to vector<8x384xf32>
    %34 = vector.extract_strided_slice %29 {offsets = [0, 19], sizes = [8, 384], strides = [1, 1]} : vector<8x422xf32> to vector<8x384xf32>
    %35 = vector.extract_strided_slice %29 {offsets = [0, 20], sizes = [8, 384], strides = [1, 1]} : vector<8x422xf32> to vector<8x384xf32>
    %36 = vector.extract_strided_slice %29 {offsets = [0, 36], sizes = [8, 384], strides = [1, 1]} : vector<8x422xf32> to vector<8x384xf32>
    %37 = vector.extract_strided_slice %29 {offsets = [0, 37], sizes = [8, 384], strides = [1, 1]} : vector<8x422xf32> to vector<8x384xf32>
    %38 = vector.extract_strided_slice %29 {offsets = [0, 38], sizes = [8, 384], strides = [1, 1]} : vector<8x422xf32> to vector<8x384xf32>
    %39 = tpu.concatenate %30, %31, %32, %33, %34, %35, %36, %37, %38 in 0 : vector<8x384xf32>, vector<8x384xf32>, vector<8x384xf32>, vector<8x384xf32>, vector<8x384xf32>, vector<8x384xf32>, vector<8x384xf32>, vector<8x384xf32>, vector<8x384xf32> -> vector<72x384xf32>
    %c0_8 = arith.constant 0 : index
    %c0_9 = arith.constant 0 : index
    %40 = vector.load %arg5[%c0_8, %c0_9] : memref<8x72xf32, #tpu.memory_space<vmem>>, vector<8x72xf32>
    %cst_10 = arith.constant dense<0.000000e+00> : vector<8x384xf32>
    %41 = tpu.matmul %40, %39, %cst_10 {dimension_numbers = #tpu.dot_dimension_numbers<[1], [0], [0], [1], [0, 0, 1, 1], [], []>} : vector<8x72xf32>, vector<72x384xf32>, vector<8x384xf32> -> vector<8x384xf32>
    %c0_11 = arith.constant 0 : index
    %c0_12 = arith.constant 0 : index
    %42 = vector.load %arg6[%c0_11, %c0_12] : memref<8x1xf32, #tpu.memory_space<vmem>>, vector<8x1xf32>
    %43 = vector.broadcast %42 : vector<8x1xf32> to vector<8x384xf32>
    %44 = arith.addf %41, %43 : vector<8x384xf32>
    %c0_13 = arith.constant 0 : index
    %c0_14 = arith.constant 0 : index
    %c0_15 = arith.constant 0 : index
    %45 = vector.load %arg9[%c0_13, %c0_14, %c0_15] : memref<1x8x384xf32, #tpu.memory_space<vmem>>, vector<1x8x384xf32>
    %46 = vector.shape_cast %45 : vector<1x8x384xf32> to vector<8x384xf32>
    %47 = vector.shape_cast %44 : vector<8x384xf32> to vector<1x8x384xf32>
    tpu.vector_store %arg9[%c0_13, %c0_14, %c0_15], %47 {strides = array<i32>} : memref<1x8x384xf32, #tpu.memory_space<vmem>>, vector<1x8x384xf32>,
    return
  }
  func.func @transform_0(%arg0: i32, %arg1: i32) -> (i32, i32, i32) {
    %c0_i32 = arith.constant 0 : i32
    %c0_i32_0 = arith.constant 0 : i32
    %c0_i32_1 = arith.constant 0 : i32
    return %arg0, %c0_i32, %c0_i32_0 : i32, i32, i32
  }
  func.func @transform_1(%arg0: i32, %arg1: i32) -> (i32, i32) {
    %c0_i32 = arith.constant 0 : i32
    %c0_i32_0 = arith.constant 0 : i32
    %c0_i32_1 = arith.constant 0 : i32
    return %c0_i32, %c0_i32_0 : i32, i32
  }
  func.func @transform_2(%arg0: i32, %arg1: i32) -> (i32, i32) {
    %c0_i32 = arith.constant 0 : i32
    %c0_i32_0 = arith.constant 0 : i32
    %c0_i32_1 = arith.constant 0 : i32
    return %c0_i32, %c0_i32_0 : i32, i32
  }
  func.func @transform_3(%arg0: i32, %arg1: i32) -> (i32, i32) {
    %c0_i32 = arith.constant 0 : i32
    %c0_i32_0 = arith.constant 0 : i32
    %c0_i32_1 = arith.constant 0 : i32
    return %c0_i32, %c0_i32_0 : i32, i32
  }
  func.func @transform_4(%arg0: i32, %arg1: i32) -> (i32, i32) {
    %c0_i32 = arith.constant 0 : i32
    %c0_i32_0 = arith.constant 0 : i32
    %c0_i32_1 = arith.constant 0 : i32
    return %c0_i32, %c0_i32_0 : i32, i32
  }
  func.func @transform_5(%arg0: i32, %arg1: i32) -> (i32, i32) {
    %c0_i32 = arith.constant 0 : i32
    %c0_i32_0 = arith.constant 0 : i32
    %c0_i32_1 = arith.constant 0 : i32
    return %c0_i32, %c0_i32_0 : i32, i32
  }
  func.func @transform_6(%arg0: i32, %arg1: i32) -> i32 {
    %c0_i32 = arith.constant 0 : i32
    %c0_i32_0 = arith.constant 0 : i32
    return %c0_i32 : i32
  }
  func.func @transform_7(%arg0: i32, %arg1: i32) -> (i32, i32, i32) {
    %c0_i32 = arith.constant 0 : i32
    %c0_i32_0 = arith.constant 0 : i32
    return %arg0, %c0_i32, %arg1 : i32, i32, i32
  }
}

</mosaic_0001>

<llo_original>
// kernel: encoding_block_end_forward.1
$region0: #{encoding_block_end_forward.1}
  #allocation0 [shape = 'u32[]', space=smem, size = 0x4, offset = 0x4, fixed_abs, tag = 'smem constant byte address 0x4 - core index']
  #allocation1 [shape = 'u32[72,128]{1,0:T(1,128)}', space=vmem, size = 0x9000, scoped, tag = 'internal scratch']
  #allocation2 [shape = 'f32[1]{0:T(128)S(6)}', space=smem, size = 0x200, scoped, tag = 'scoped memory for encoding_block_end_forward.1']
  %s0 = inlined_call_operand.vmem [shape: f32[2,8,460], index: 0, kind: input, shape index: {}]
  %s1 = inlined_call_operand.vmem [shape: f32[8,72], index: 1, kind: input, shape index: {}]
  %s2 = inlined_call_operand.vmem [shape: f32[8,1], index: 2, kind: input, shape index: {}]
  %s3 = inlined_call_operand.vmem [shape: f32[8,72], index: 3, kind: input, shape index: {}]
  %s4 = inlined_call_operand.vmem [shape: f32[8,1], index: 4, kind: input, shape index: {}]
  %s5 = inlined_call_operand.vmem [shape: f32[1,422], index: 5, kind: input, shape index: {}]
  %s6 = inlined_call_operand.<no memory space> [shape: f32[1], index: 6, kind: input, shape index: {}]
  %s7 = inlined_call_operand.vmem [shape: f32[2,8,384], index: 7, kind: output, shape index: {}]
  %s8 = sld [smem:[#allocation0]]
  $region61: #{encoding_block_end_forward.1} parent=0
    _
  %s10 = ssub.s32 1, %s8
  %s11 = scalar_select 0, %s10, %s8
  %12 = sst [smem:[#allocation2]] %s6
  loop: start=0, step=1, limit=4
  $region2: #{encoding_block_end_forward.1} parent=0 // loop_pre_header
    _
  $region3: #{encoding_block_end_forward.1} parent=0 // loop_header
    %s14 = sphi 0, %s18
    %p15 = scmp.ge.s32.totalorder %s14, 4
    %s21 = sphi 0, %s33
    %s22 = sphi 0, %s29
    %s23 = sphi 0, %s21
    %s24 = sphi 0, %s22
    %s25 = sphi 0, %s23
    %s26 = sphi 0, %s24
    %s36 = sphi 0, %s38
    %s39 = sphi 0, %s36
    %s40 = sphi 0, %s39
    %s56 = sphi 0, %s40
    %s60 = sphi 0, %s60
    %s62 = sphi 0, %s60
    %s63 = sphi 0, %s62
    %s77 = sphi 0, %s63
    %s81 = sphi 0, %s81
    %s83 = sphi 0, %s81
    %s84 = sphi 0, %s83
    %s98 = sphi 0, %s84
    %s102 = sphi 0, %s102
    %s104 = sphi 0, %s102
    %s105 = sphi 0, %s104
    %s119 = sphi 0, %s105
    %s123 = sphi 0, %s123
    %s125 = sphi 0, %s123
    %s126 = sphi 0, %s125
    %s140 = sphi 0, %s126
    %s144 = sphi 0, %s144
    %s146 = sphi 0, %s144
    %s147 = sphi 0, %s146
    %s161 = sphi 0, %s147
    %s165 = sphi 0, %s165
    %s167 = sphi 0, %s165
    %s168 = sphi 0, %s167
    %s182 = sphi 0, %s168
    %s190 = sphi 0, %s192
    %s193 = sphi 0, %s190
    %s194 = sphi 0, %s193
    %s210 = sphi 0, %s194
  $region4: #{encoding_block_end_forward.1} parent=0 // loop_header_branch
    %17 = sbr.rel (%p15) target = $region8
  $region5: #{encoding_block_end_forward.1} parent=0 // loop_body
    %s19 = ssub.s32 %s14, 1
    %s20 = ssub.s32 %s14, 2
    %s27 = sadd.s32 1, %s22
    %p28 = scmp.ge.s32.totalorder %s27, 1
    %s29 = scalar_select %p28, 0, %s27
    %s30 = sadd.s32 1, %s21
    %s31 = scalar_select %p28, %s30, %s21
    %p32 = scmp.ge.s32.totalorder %s31, 2
    %s33 = scalar_select %p32, 0, %s31
    %s34 = ssub.s32 %s21, %s33
    %p35 = scmp.eq.s32.totalorder %s34, 0
    %s37 = sadd.s32 %s36, 1
    %s38 = scalar_select %p35, %s36, %s37
    %p41 = pneg %p35
    %p42 = scmp.eq.s32.totalorder %s14, 1
    %p43 = por %p41, %p42
    %p44 = scmp.ne.s32.totalorder %s36, %s39
    %p45 = scmp.eq.s32.totalorder %s14, 0
    %p46 = por %p44, %p45
    %p47 = scmp.ne.s32.totalorder %s36, %s39
    %p48 = scmp.eq.s32.totalorder %s19, 1
    %p49 = por %p47, %p48
    %p50 = scmp.ne.s32.totalorder %s39, %s40
    %p51 = scmp.eq.s32.totalorder %s19, 0
    %p52 = por %p50, %p51
    %p53 = scmp.ne.s32.totalorder %s39, %s40
    %p54 = scmp.eq.s32.totalorder %s20, 1
    %p55 = por %p53, %p54
    %p57 = scmp.ne.s32.totalorder %s40, %s56
    %p58 = scmp.eq.s32.totalorder %s20, 0
    %p59 = por %p57, %p58
    %s61 = sadd.s32 %s60, 1
    %p64 = scmp.eq.s32.totalorder %s14, 1
    %p65 = scmp.ne.s32.totalorder %s60, %s62
    %p66 = scmp.eq.s32.totalorder %s14, 0
    %p67 = por %p65, %p66
    %p68 = scmp.ne.s32.totalorder %s60, %s62
    %p69 = scmp.eq.s32.totalorder %s19, 1
    %p70 = por %p68, %p69
    %p71 = scmp.ne.s32.totalorder %s62, %s63
    %p72 = scmp.eq.s32.totalorder %s19, 0
    %p73 = por %p71, %p72
    %p74 = scmp.ne.s32.totalorder %s62, %s63
    %p75 = scmp.eq.s32.totalorder %s20, 1
    %p76 = por %p74, %p75
    %p78 = scmp.ne.s32.totalorder %s63, %s77
    %p79 = scmp.eq.s32.totalorder %s20, 0
    %p80 = por %p78, %p79
    %s82 = sadd.s32 %s81, 1
    %p85 = scmp.eq.s32.totalorder %s14, 1
    %p86 = scmp.ne.s32.totalorder %s81, %s83
    %p87 = scmp.eq.s32.totalorder %s14, 0
    %p88 = por %p86, %p87
    %p89 = scmp.ne.s32.totalorder %s81, %s83
    %p90 = scmp.eq.s32.totalorder %s19, 1
    %p91 = por %p89, %p90
    %p92 = scmp.ne.s32.totalorder %s83, %s84
    %p93 = scmp.eq.s32.totalorder %s19, 0
    %p94 = por %p92, %p93
    %p95 = scmp.ne.s32.totalorder %s83, %s84
    %p96 = scmp.eq.s32.totalorder %s20, 1
    %p97 = por %p95, %p96
    %p99 = scmp.ne.s32.totalorder %s84, %s98
    %p100 = scmp.eq.s32.totalorder %s20, 0
    %p101 = por %p99, %p100
    %s103 = sadd.s32 %s102, 1
    %p106 = scmp.eq.s32.totalorder %s14, 1
    %p107 = scmp.ne.s32.totalorder %s102, %s104
    %p108 = scmp.eq.s32.totalorder %s14, 0
    %p109 = por %p107, %p108
    %p110 = scmp.ne.s32.totalorder %s102, %s104
    %p111 = scmp.eq.s32.totalorder %s19, 1
    %p112 = por %p110, %p111
    %p113 = scmp.ne.s32.totalorder %s104, %s105
    %p114 = scmp.eq.s32.totalorder %s19, 0
    %p115 = por %p113, %p114
    %p116 = scmp.ne.s32.totalorder %s104, %s105
    %p117 = scmp.eq.s32.totalorder %s20, 1
    %p118 = por %p116, %p117
    %p120 = scmp.ne.s32.totalorder %s105, %s119
    %p121 = scmp.eq.s32.totalorder %s20, 0
    %p122 = por %p120, %p121
    %s124 = sadd.s32 %s123, 1
    %p127 = scmp.eq.s32.totalorder %s14, 1
    %p128 = scmp.ne.s32.totalorder %s123, %s125
    %p129 = scmp.eq.s32.totalorder %s14, 0
    %p130 = por %p128, %p129
    %p131 = scmp.ne.s32.totalorder %s123, %s125
    %p132 = scmp.eq.s32.totalorder %s19, 1
    %p133 = por %p131, %p132
    %p134 = scmp.ne.s32.totalorder %s125, %s126
    %p135 = scmp.eq.s32.totalorder %s19, 0
    %p136 = por %p134, %p135
    %p137 = scmp.ne.s32.totalorder %s125, %s126
    %p138 = scmp.eq.s32.totalorder %s20, 1
    %p139 = por %p137, %p138
    %p141 = scmp.ne.s32.totalorder %s126, %s140
    %p142 = scmp.eq.s32.totalorder %s20, 0
    %p143 = por %p141, %p142
    %s145 = sadd.s32 %s144, 1
    %p148 = scmp.eq.s32.totalorder %s14, 1
    %p149 = scmp.ne.s32.totalorder %s144, %s146
    %p150 = scmp.eq.s32.totalorder %s14, 0
    %p151 = por %p149, %p150
    %p152 = scmp.ne.s32.totalorder %s144, %s146
    %p153 = scmp.eq.s32.totalorder %s19, 1
    %p154 = por %p152, %p153
    %p155 = scmp.ne.s32.totalorder %s146, %s147
    %p156 = scmp.eq.s32.totalorder %s19, 0
    %p157 = por %p155, %p156
    %p158 = scmp.ne.s32.totalorder %s146, %s147
    %p159 = scmp.eq.s32.totalorder %s20, 1
    %p160 = por %p158, %p159
    %p162 = scmp.ne.s32.totalorder %s147, %s161
    %p163 = scmp.eq.s32.totalorder %s20, 0
    %p164 = por %p162, %p163
    %s166 = sadd.s32 %s165, 1
    %p169 = scmp.eq.s32.totalorder %s14, 1
    %p170 = scmp.ne.s32.totalorder %s165, %s167
    %p171 = scmp.eq.s32.totalorder %s14, 0
    %p172 = por %p170, %p171
    %p173 = scmp.ne.s32.totalorder %s165, %s167
    %p174 = scmp.eq.s32.totalorder %s19, 1
    %p175 = por %p173, %p174
    %p176 = scmp.ne.s32.totalorder %s167, %s168
    %p177 = scmp.eq.s32.totalorder %s19, 0
    %p178 = por %p176, %p177
    %p179 = scmp.ne.s32.totalorder %s167, %s168
    %p180 = scmp.eq.s32.totalorder %s20, 1
    %p181 = por %p179, %p180
    %p183 = scmp.ne.s32.totalorder %s168, %s182
    %p184 = scmp.eq.s32.totalorder %s20, 0
    %p185 = por %p183, %p184
    %s186 = ssub.s32 %s21, %s33
    %s187 = ssub.s32 %s22, %s29
    %s188 = sor.u32 %s186, %s187
    %p189 = scmp.eq.s32.totalorder %s188, 0
    %s191 = sadd.s32 %s190, 1
    %s192 = scalar_select %p189, %s190, %s191
    %p195 = pneg %p189
    %p196 = scmp.eq.s32.totalorder %s14, 1
    %p197 = por %p195, %p196
    %p198 = scmp.ne.s32.totalorder %s190, %s193
    %p199 = scmp.eq.s32.totalorder %s14, 0
    %p200 = por %p198, %p199
    %p201 = scmp.ne.s32.totalorder %s190, %s193
    %p202 = scmp.eq.s32.totalorder %s19, 1
    %p203 = por %p201, %p202
    %p204 = scmp.ne.s32.totalorder %s193, %s194
    %p205 = scmp.eq.s32.totalorder %s19, 0
    %p206 = por %p204, %p205
    %p207 = scmp.ne.s32.totalorder %s193, %s194
    %p208 = scmp.eq.s32.totalorder %s20, 1
    %p209 = por %p207, %p208
    %p211 = scmp.ne.s32.totalorder %s194, %s210
    %p212 = scmp.eq.s32.totalorder %s20, 0
    %p213 = por %p211, %p212
    %p214 = scmp.le.s32.totalorder 1, %s14
    %p215 = scmp.lt.s32.totalorder %s14, 3
    %p216 = pnand %p214, %p215
    %p217 = pneg %p216
    // Predicated region
    $region9: #{encoding_block_end_forward.1} parent=5 // pred_check
      _
    $region10: #{encoding_block_end_forward.1} parent=5 // pred_check_branch
      %219 = sbr.rel (%p216) target = $region12
    $region11: #{encoding_block_end_forward.1} parent=5 // pred_region
      %s220 = ssub.s32 %s14, 1
      // Predicated region
      $region13: #{encoding_block_end_forward.1} parent=11 // pred_check
        %p221 = pneg %p73
      $region14: #{encoding_block_end_forward.1} parent=11 // pred_check_branch
        %223 = sbr.rel (%p221) target = $region16
      $region15: #{encoding_block_end_forward.1} parent=11 // pred_region
        _
      $region16: #{encoding_block_end_forward.1} parent=11 // pred_fallthru
        _
      // Predicated region
      $region17: #{encoding_block_end_forward.1} parent=11 // pred_check
        %p224 = pneg %p94
      $region18: #{encoding_block_end_forward.1} parent=11 // pred_check_branch
        %226 = sbr.rel (%p224) target = $region20
      $region19: #{encoding_block_end_forward.1} parent=11 // pred_region
        _
      $region20: #{encoding_block_end_forward.1} parent=11 // pred_fallthru
        _
      // Predicated region
      $region21: #{encoding_block_end_forward.1} parent=11 // pred_check
        %p227 = pneg %p115
      $region22: #{encoding_block_end_forward.1} parent=11 // pred_check_branch
        %229 = sbr.rel (%p227) target = $region24
      $region23: #{encoding_block_end_forward.1} parent=11 // pred_region
        _
      $region24: #{encoding_block_end_forward.1} parent=11 // pred_fallthru
        _
      // Predicated region
      $region25: #{encoding_block_end_forward.1} parent=11 // pred_check
        %p230 = pneg %p136
      $region26: #{encoding_block_end_forward.1} parent=11 // pred_check_branch
        %232 = sbr.rel (%p230) target = $region28
      $region27: #{encoding_block_end_forward.1} parent=11 // pred_region
        _
      $region28: #{encoding_block_end_forward.1} parent=11 // pred_fallthru
        _
      // Predicated region
      $region29: #{encoding_block_end_forward.1} parent=11 // pred_check
        %p233 = pneg %p157
      $region30: #{encoding_block_end_forward.1} parent=11 // pred_check_branch
        %235 = sbr.rel (%p233) target = $region32
      $region31: #{encoding_block_end_forward.1} parent=11 // pred_region
        _
      $region32: #{encoding_block_end_forward.1} parent=11 // pred_fallthru
        _
      // Predicated region
      $region33: #{encoding_block_end_forward.1} parent=11 // pred_check
        %p236 = pneg %p178
      $region34: #{encoding_block_end_forward.1} parent=11 // pred_check_branch
        %238 = sbr.rel (%p236) target = $region36
      $region35: #{encoding_block_end_forward.1} parent=11 // pred_region
        _
      $region36: #{encoding_block_end_forward.1} parent=11 // pred_fallthru
        _
    $region12: #{encoding_block_end_forward.1} parent=5 // pred_fallthru
      _
    %p239 = scmp.lt.s32.totalorder %s14, 2
    // Predicated region
    $region37: #{encoding_block_end_forward.1} parent=5 // pred_check
      %p240 = pneg %p239
    $region38: #{encoding_block_end_forward.1} parent=5 // pred_check_branch
      %242 = sbr.rel (%p240) target = $region40
    $region39: #{encoding_block_end_forward.1} parent=5 // pred_region
      // Predicated region
      $region41: #{encoding_block_end_forward.1} parent=39 // pred_check
        %p243 = pneg %p46
      $region42: #{encoding_block_end_forward.1} parent=39 // pred_check_branch
        %245 = sbr.rel (%p243) target = $region44
      $region43: #{encoding_block_end_forward.1} parent=39 // pred_region
        %p246 = scmp.lt.s32.totalorder %s21, 1
        %s247 = scalar_select %p246, %s21, 1
        %s248 = smul.addr %s247, 4
        %s249 = smul.addr %s248, 8
        %s250 = scalar_lea.vmem %s0, %s249
      $region44: #{encoding_block_end_forward.1} parent=39 // pred_fallthru
        _
    $region40: #{encoding_block_end_forward.1} parent=5 // pred_fallthru
      _
    %p251 = scmp.le.s32.totalorder 1, %s14
    %p252 = scmp.lt.s32.totalorder %s14, 3
    %p253 = pnand %p251, %p252
    %p254 = pneg %p253
    // Predicated region
    $region45: #{encoding_block_end_forward.1} parent=5 // pred_check
      _
    $region46: #{encoding_block_end_forward.1} parent=5 // pred_check_branch
      %256 = sbr.rel (%p253) target = $region48
    $region47: #{encoding_block_end_forward.1} parent=5 // pred_region
      %s257 = ssub.s32 %s14, 1
      %p258 = scmp.lt.s32.totalorder %s23, 1
      %s259 = scalar_select %p258, %s23, 1
      %s260 = smul.addr %s259, 4
      %s261 = smul.addr %s260, 8
      %s262 = scalar_lea.vmem %s0, %s261
      %p263 = pneg %p52
      %p264 = pneg %p49
      %p265 = pneg %p73
      %p266 = pneg %p70
      %p267 = pneg %p94
      %p268 = pneg %p91
      %p269 = pneg %p115
      %p270 = pneg %p112
      %p271 = pneg %p136
      %p272 = pneg %p133
      %p273 = pneg %p157
      %p274 = pneg %p154
      %p275 = pneg %p178
      %p276 = pneg %p175
      %p277 = pneg %p206
      %p278 = pneg %p203
      %s279 = smul.u32 3, %s24
      %p280 = scmp.lt.s32.totalorder %s23, 1
      %s281 = scalar_select %p280, %s23, 1
      %p282 = scmp.lt.s32.totalorder %s279, 2
      %s283 = scalar_select %p282, %s279, 2
      %s284 = smul.addr %s281, 3
      %s285 = sadd.s32 %s283, %s284
      %s286 = smul.addr %s285, 8
      %s287 = scalar_lea.vmem %s7, %s286
      %p288 = scmp.lt.s32.totalorder %s23, 1
      %s289 = scalar_select %p288, %s23, 1
      %s290 = smul.addr %s289, 4
      %s291 = smul.addr %s290, 8
      %s292 = scalar_lea.vmem %s0, %s291
      %s293 = smul.u32 3, %s24
      %p294 = scmp.lt.s32.totalorder %s23, 1
      %s295 = scalar_select %p294, %s23, 1
      %p296 = scmp.lt.s32.totalorder %s293, 2
      %s297 = scalar_select %p296, %s293, 2
      %s298 = smul.addr %s295, 3
      %s299 = sadd.s32 %s297, %s298
      %s300 = smul.addr %s299, 8
      %s301 = scalar_lea.vmem %s7, %s300
      %s302 = smul.u32 3, %s24
      %s303 = smul.u32 %s24, 384
      %s304 = sshra.s32 %s303, 7
      %s305 = sand.u32 %s303, 127
      %s306 = smul.addr %s304, 8
      %s307 = scalar_lea.vmem %s292, %s306
      %v308 = vld [vmem:[%s307] sm:$0xff]
      %v309 = vld [vmem:[%s307 + $0x8] sm:$0xff]
      %v310 = vld [vmem:[%s307 + $0x10] sm:$0xff]
      %v311 = vld [vmem:[%s307 + $0x18] sm:$0xff]
      %316 = vrot.lane.b32.xlu0 %v308, 127
      %v317 = vpop.permute.xlu0 %316
      %318 = vrot.lane.b32.xlu0 %v309, 127
      %v319 = vpop.permute.xlu0 %318
      %320 = vrot.lane.b32.xlu0 %v310, 127
      %v321 = vpop.permute.xlu0 %320
      %322 = vrot.lane.b32.xlu0 %v311, 127
      %v323 = vpop.permute.xlu0 %322
      %vm324 = vcmask 1039360
      %v325 = vsel %vm324, %v317, %v319
      %v326 = vsel %vm324, %v319, %v321
      %v327 = vsel %vm324, %v321, %v323
      %332 = vrot.lane.b32.xlu0 %v308, 126
      %v333 = vpop.permute.xlu0 %332
      %334 = vrot.lane.b32.xlu0 %v309, 126
      %v335 = vpop.permute.xlu0 %334
      %336 = vrot.lane.b32.xlu0 %v310, 126
      %v337 = vpop.permute.xlu0 %336
      %338 = vrot.lane.b32.xlu0 %v311, 126
      %v339 = vpop.permute.xlu0 %338
      %vm340 = vcmask 1031168
      %v341 = vsel %vm340, %v333, %v335
      %v342 = vsel %vm340, %v335, %v337
      %v343 = vsel %vm340, %v337, %v339
      %348 = vrot.lane.b32.xlu0 %v308, 110
      %v349 = vpop.permute.xlu0 %348
      %350 = vrot.lane.b32.xlu0 %v309, 110
      %v351 = vpop.permute.xlu0 %350
      %352 = vrot.lane.b32.xlu0 %v310, 110
      %v353 = vpop.permute.xlu0 %352
      %354 = vrot.lane.b32.xlu0 %v311, 110
      %v355 = vpop.permute.xlu0 %354
      %vm356 = vcmask 900096
      %v357 = vsel %vm356, %v349, %v351
      %v358 = vsel %vm356, %v351, %v353
      %v359 = vsel %vm356, %v353, %v355
      %364 = vrot.lane.b32.xlu0 %v308, 109
      %v365 = vpop.permute.xlu0 %364
      %366 = vrot.lane.b32.xlu0 %v309, 109
      %v367 = vpop.permute.xlu0 %366
      %368 = vrot.lane.b32.xlu0 %v310, 109
      %v369 = vpop.permute.xlu0 %368
      %370 = vrot.lane.b32.xlu0 %v311, 109
      %v371 = vpop.permute.xlu0 %370
      %vm372 = vcmask 891904
      %v373 = vsel %vm372, %v365, %v367
      %v374 = vsel %vm372, %v367, %v369
      %v375 = vsel %vm372, %v369, %v371
      %380 = vrot.lane.b32.xlu0 %v308, 108
      %v381 = vpop.permute.xlu0 %380
      %382 = vrot.lane.b32.xlu0 %v309, 108
      %v383 = vpop.permute.xlu0 %382
      %384 = vrot.lane.b32.xlu0 %v310, 108
      %v385 = vpop.permute.xlu0 %384
      %386 = vrot.lane.b32.xlu0 %v311, 108
      %v387 = vpop.permute.xlu0 %386
      %vm388 = vcmask 883712
      %v389 = vsel %vm388, %v381, %v383
      %v390 = vsel %vm388, %v383, %v385
      %v391 = vsel %vm388, %v385, %v387
      %396 = vrot.lane.b32.xlu0 %v308, 92
      %v397 = vpop.permute.xlu0 %396
      %398 = vrot.lane.b32.xlu0 %v309, 92
      %v399 = vpop.permute.xlu0 %398
      %400 = vrot.lane.b32.xlu0 %v310, 92
      %v401 = vpop.permute.xlu0 %400
      %402 = vrot.lane.b32.xlu0 %v311, 92
      %v403 = vpop.permute.xlu0 %402
      %vm404 = vcmask 752640
      %v405 = vsel %vm404, %v397, %v399
      %v406 = vsel %vm404, %v399, %v401
      %v407 = vsel %vm404, %v401, %v403
      %412 = vrot.lane.b32.xlu0 %v308, 91
      %v413 = vpop.permute.xlu0 %412
      %414 = vrot.lane.b32.xlu0 %v309, 91
      %v415 = vpop.permute.xlu0 %414
      %416 = vrot.lane.b32.xlu0 %v310, 91
      %v417 = vpop.permute.xlu0 %416
      %418 = vrot.lane.b32.xlu0 %v311, 91
      %v419 = vpop.permute.xlu0 %418
      %vm420 = vcmask 744448
      %v421 = vsel %vm420, %v413, %v415
      %v422 = vsel %vm420, %v415, %v417
      %v423 = vsel %vm420, %v417, %v419
      %428 = vrot.lane.b32.xlu0 %v308, 90
      %v429 = vpop.permute.xlu0 %428
      %430 = vrot.lane.b32.xlu0 %v309, 90
      %v431 = vpop.permute.xlu0 %430
      %432 = vrot.lane.b32.xlu0 %v310, 90
      %v433 = vpop.permute.xlu0 %432
      %434 = vrot.lane.b32.xlu0 %v311, 90
      %v435 = vpop.permute.xlu0 %434
      %vm436 = vcmask 736256
      %v437 = vsel %vm436, %v429, %v431
      %v438 = vsel %vm436, %v431, %v433
      %v439 = vsel %vm436, %v433, %v435
      %v444 = vld [vmem:[%s1] sm:$0xff]
      %v445 = vld [vmem:[%s2] sm:$0xff]
      %447 = vset.pattern.permute.xlu0 0
      %448 = vperm.xlu0 %447, %v445
      %v449 = vpop.permute.xlu0 %448
      %vm451 = vcmask 588800
      %v453 = vsel %vm451, %v444, 0
      %455 = vmatpush.msra.mxu0 0.0
      %456 = vmatpush.msra.mxu0 0.0
      %457 = vmatpush.msra.mxu0 0.0
      %458 = vmatpush.msra.mxu0 0.0
      %459 = vmatpush.msra.mxu0 0.0
      %460 = vmatpush.msra.mxu0 0.0
      %461 = vmatpush.msra.mxu0 0.0
      %462 = vmatpush.msra.mxu0 %v437
      %463 = vmatpush.msra.mxu0 %v421
      %464 = vmatpush.msra.mxu0 %v405
      %465 = vmatpush.msra.mxu0 %v389
      %466 = vmatpush.msra.mxu0 %v373
      %467 = vmatpush.msra.mxu0 %v357
      %468 = vmatpush.msra.mxu0 %v341
      %469 = vmatpush.msra.mxu0 %v325
      %470 = vmatpush.msra.mxu0 %v308
      %471 = vmatmul.f32.gmra.mxu0 %v453
      %v472 = vpop.f32.mrf.mxu0
      %v473 = vadd.f32 %v449, %v472
      %474 = vdwg.mxu0
      %475 = vmatpush.msra.mxu0 0.0
      %476 = vmatpush.msra.mxu0 0.0
      %477 = vmatpush.msra.mxu0 0.0
      %478 = vmatpush.msra.mxu0 0.0
      %479 = vmatpush.msra.mxu0 0.0
      %480 = vmatpush.msra.mxu0 0.0
      %481 = vmatpush.msra.mxu0 0.0
      %482 = vmatpush.msra.mxu0 %v438
      %483 = vmatpush.msra.mxu0 %v422
      %484 = vmatpush.msra.mxu0 %v406
      %485 = vmatpush.msra.mxu0 %v390
      %486 = vmatpush.msra.mxu0 %v374
      %487 = vmatpush.msra.mxu0 %v358
      %488 = vmatpush.msra.mxu0 %v342
      %489 = vmatpush.msra.mxu0 %v326
      %490 = vmatpush.msra.mxu0 %v309
      %491 = vmatmul.f32.gmra.mxu0 %v453
      %v492 = vpop.f32.mrf.mxu0
      %v493 = vadd.f32 %v449, %v492
      %494 = vdwg.mxu0
      %495 = vmatpush.msra.mxu0 0.0
      %496 = vmatpush.msra.mxu0 0.0
      %497 = vmatpush.msra.mxu0 0.0
      %498 = vmatpush.msra.mxu0 0.0
      %499 = vmatpush.msra.mxu0 0.0
      %500 = vmatpush.msra.mxu0 0.0
      %501 = vmatpush.msra.mxu0 0.0
      %502 = vmatpush.msra.mxu0 %v439
      %503 = vmatpush.msra.mxu0 %v423
      %504 = vmatpush.msra.mxu0 %v407
      %505 = vmatpush.msra.mxu0 %v391
      %506 = vmatpush.msra.mxu0 %v375
      %507 = vmatpush.msra.mxu0 %v359
      %508 = vmatpush.msra.mxu0 %v343
      %509 = vmatpush.msra.mxu0 %v327
      %510 = vmatpush.msra.mxu0 %v310
      %511 = vmatmul.f32.gmra.mxu0 %v453
      %v512 = vpop.f32.mrf.mxu0
      %v513 = vadd.f32 %v449, %v512
      %514 = vdwg.mxu0
      %515 = vmatpush.msra.mxu0 0.0
      %516 = vmatpush.msra.mxu0 0.0
      %517 = vmatpush.msra.mxu0 0.0
      %518 = vmatpush.msra.mxu0 0.0
      %519 = vmatpush.msra.mxu0 0.0
      %520 = vmatpush.msra.mxu0 0.0
      %521 = vmatpush.msra.mxu0 0.0
      %522 = vmatpush.msra.mxu0 %v435
      %523 = vmatpush.msra.mxu0 %v419
      %524 = vmatpush.msra.mxu0 %v403
      %525 = vmatpush.msra.mxu0 %v387
      %526 = vmatpush.msra.mxu0 %v371
      %527 = vmatpush.msra.mxu0 %v355
      %528 = vmatpush.msra.mxu0 %v339
      %529 = vmatpush.msra.mxu0 %v323
      %530 = vmatpush.msra.mxu0 %v311
      %531 = vmatmul.f32.gmra.mxu0 %v453
      %v532 = vpop.f32.mrf.mxu0
      %v533 = vadd.f32 %v449, %v532
      %534 = vdwg.mxu0
      %s535 = sld [smem:[#allocation2]]
      %vm536 = vcmp.ge.f32.partialorder %v473, 0.0
      %vm537 = vcmp.ge.f32.partialorder %v493, 0.0
      %vm538 = vcmp.ge.f32.partialorder %v513, 0.0
      %vm539 = vcmp.ge.f32.partialorder %v533, 0.0
      %v540 = vstv %s535
      %v541 = vmul.f32 %v540, %v473
      %v542 = vmul.f32 %v540, %v493
      %v543 = vmul.f32 %v540, %v513
      %v544 = vmul.f32 %v540, %v533
      %v545 = vsel %vm536, %v473, %v541
      %v546 = vsel %vm537, %v493, %v542
      %v547 = vsel %vm538, %v513, %v543
      %v548 = vsel %vm539, %v533, %v544
      %s549 = scalar_lea.vmem %s5, %s304
      %v550 = vld [vmem:[%s549] sm:$0xf]
      %v552 = vperm.slane %v550, 0
      %v553 = vperm.slane %v550, 1
      %v554 = vperm.slane %v550, 2
      %v555 = vperm.slane %v550, 3
      %v560 = vmul.f32 %v545, %v552
      %v561 = vmul.f32 %v546, %v553
      %v562 = vmul.f32 %v547, %v554
      %v563 = vmul.f32 %v548, %v555
      %568 = vrot.lane.b32.xlu0 %v560, 127
      %v569 = vpop.permute.xlu0 %568
      %570 = vrot.lane.b32.xlu0 %v561, 127
      %v571 = vpop.permute.xlu0 %570
      %572 = vrot.lane.b32.xlu0 %v562, 127
      %v573 = vpop.permute.xlu0 %572
      %574 = vrot.lane.b32.xlu0 %v563, 127
      %v575 = vpop.permute.xlu0 %574
      %v576 = vsel %vm324, %v569, %v571
      %v577 = vsel %vm324, %v571, %v573
      %v578 = vsel %vm324, %v573, %v575
      %582 = vrot.lane.b32.xlu0 %v560, 126
      %v583 = vpop.permute.xlu0 %582
      %584 = vrot.lane.b32.xlu0 %v561, 126
      %v585 = vpop.permute.xlu0 %584
      %586 = vrot.lane.b32.xlu0 %v562, 126
      %v587 = vpop.permute.xlu0 %586
      %588 = vrot.lane.b32.xlu0 %v563, 126
      %v589 = vpop.permute.xlu0 %588
      %v590 = vsel %vm340, %v583, %v585
      %v591 = vsel %vm340, %v585, %v587
      %v592 = vsel %vm340, %v587, %v589
      %596 = vrot.lane.b32.xlu0 %v560, 110
      %v597 = vpop.permute.xlu0 %596
      %598 = vrot.lane.b32.xlu0 %v561, 110
      %v599 = vpop.permute.xlu0 %598
      %600 = vrot.lane.b32.xlu0 %v562, 110
      %v601 = vpop.permute.xlu0 %600
      %602 = vrot.lane.b32.xlu0 %v563, 110
      %v603 = vpop.permute.xlu0 %602
      %v604 = vsel %vm356, %v597, %v599
      %v605 = vsel %vm356, %v599, %v601
      %v606 = vsel %vm356, %v601, %v603
      %610 = vrot.lane.b32.xlu0 %v560, 109
      %v611 = vpop.permute.xlu0 %610
      %612 = vrot.lane.b32.xlu0 %v561, 109
      %v613 = vpop.permute.xlu0 %612
      %614 = vrot.lane.b32.xlu0 %v562, 109
      %v615 = vpop.permute.xlu0 %614
      %616 = vrot.lane.b32.xlu0 %v563, 109
      %v617 = vpop.permute.xlu0 %616
      %v618 = vsel %vm372, %v611, %v613
      %v619 = vsel %vm372, %v613, %v615
      %v620 = vsel %vm372, %v615, %v617
      %624 = vrot.lane.b32.xlu0 %v560, 108
      %v625 = vpop.permute.xlu0 %624
      %626 = vrot.lane.b32.xlu0 %v561, 108
      %v627 = vpop.permute.xlu0 %626
      %628 = vrot.lane.b32.xlu0 %v562, 108
      %v629 = vpop.permute.xlu0 %628
      %630 = vrot.lane.b32.xlu0 %v563, 108
      %v631 = vpop.permute.xlu0 %630
      %v632 = vsel %vm388, %v625, %v627
      %v633 = vsel %vm388, %v627, %v629
      %v634 = vsel %vm388, %v629, %v631
      %638 = vrot.lane.b32.xlu0 %v560, 92
      %v639 = vpop.permute.xlu0 %638
      %640 = vrot.lane.b32.xlu0 %v561, 92
      %v641 = vpop.permute.xlu0 %640
      %642 = vrot.lane.b32.xlu0 %v562, 92
      %v643 = vpop.permute.xlu0 %642
      %644 = vrot.lane.b32.xlu0 %v563, 92
      %v645 = vpop.permute.xlu0 %644
      %v646 = vsel %vm404, %v639, %v641
      %v647 = vsel %vm404, %v641, %v643
      %v648 = vsel %vm404, %v643, %v645
      %652 = vrot.lane.b32.xlu0 %v560, 91
      %v653 = vpop.permute.xlu0 %652
      %654 = vrot.lane.b32.xlu0 %v561, 91
      %v655 = vpop.permute.xlu0 %654
      %656 = vrot.lane.b32.xlu0 %v562, 91
      %v657 = vpop.permute.xlu0 %656
      %658 = vrot.lane.b32.xlu0 %v563, 91
      %v659 = vpop.permute.xlu0 %658
      %v660 = vsel %vm420, %v653, %v655
      %v661 = vsel %vm420, %v655, %v657
      %v662 = vsel %vm420, %v657, %v659
      %666 = vrot.lane.b32.xlu0 %v560, 90
      %v667 = vpop.permute.xlu0 %666
      %668 = vrot.lane.b32.xlu0 %v561, 90
      %v669 = vpop.permute.xlu0 %668
      %670 = vrot.lane.b32.xlu0 %v562, 90
      %v671 = vpop.permute.xlu0 %670
      %672 = vrot.lane.b32.xlu0 %v563, 90
      %v673 = vpop.permute.xlu0 %672
      %v674 = vsel %vm436, %v667, %v669
      %v675 = vsel %vm436, %v669, %v671
      %v676 = vsel %vm436, %v671, %v673
      %v680 = vld [vmem:[%s3] sm:$0xff]
      %v681 = vld [vmem:[%s4] sm:$0xff]
      %683 = vset.pattern.permute.xlu0 0
      %684 = vperm.xlu0 %683, %v681
      %v685 = vpop.permute.xlu0 %684
      %v688 = vsel %vm451, %v680, 0
      %690 = vmatpush.msra.mxu0 0.0
      %691 = vmatpush.msra.mxu0 0.0
      %692 = vmatpush.msra.mxu0 0.0
      %693 = vmatpush.msra.mxu0 0.0
      %694 = vmatpush.msra.mxu0 0.0
      %695 = vmatpush.msra.mxu0 0.0
      %696 = vmatpush.msra.mxu0 0.0
      %697 = vmatpush.msra.mxu0 %v674
      %698 = vmatpush.msra.mxu0 %v660
      %699 = vmatpush.msra.mxu0 %v646
      %700 = vmatpush.msra.mxu0 %v632
      %701 = vmatpush.msra.mxu0 %v618
      %702 = vmatpush.msra.mxu0 %v604
      %703 = vmatpush.msra.mxu0 %v590
      %704 = vmatpush.msra.mxu0 %v576
      %705 = vmatpush.msra.mxu0 %v560
      %706 = vmatmul.f32.gmra.mxu0 %v688
      %v707 = vpop.f32.mrf.mxu0
      %v708 = vadd.f32 %v685, %v707
      %709 = vdwg.mxu0
      %710 = vmatpush.msra.mxu0 0.0
      %711 = vmatpush.msra.mxu0 0.0
      %712 = vmatpush.msra.mxu0 0.0
      %713 = vmatpush.msra.mxu0 0.0
      %714 = vmatpush.msra.mxu0 0.0
      %715 = vmatpush.msra.mxu0 0.0
      %716 = vmatpush.msra.mxu0 0.0
      %717 = vmatpush.msra.mxu0 %v675
      %718 = vmatpush.msra.mxu0 %v661
      %719 = vmatpush.msra.mxu0 %v647
      %720 = vmatpush.msra.mxu0 %v633
      %721 = vmatpush.msra.mxu0 %v619
      %722 = vmatpush.msra.mxu0 %v605
      %723 = vmatpush.msra.mxu0 %v591
      %724 = vmatpush.msra.mxu0 %v577
      %725 = vmatpush.msra.mxu0 %v561
      %726 = vmatmul.f32.gmra.mxu0 %v688
      %v727 = vpop.f32.mrf.mxu0
      %v728 = vadd.f32 %v685, %v727
      %729 = vdwg.mxu0
      %730 = vmatpush.msra.mxu0 0.0
      %731 = vmatpush.msra.mxu0 0.0
      %732 = vmatpush.msra.mxu0 0.0
      %733 = vmatpush.msra.mxu0 0.0
      %734 = vmatpush.msra.mxu0 0.0
      %735 = vmatpush.msra.mxu0 0.0
      %736 = vmatpush.msra.mxu0 0.0
      %737 = vmatpush.msra.mxu0 %v676
      %738 = vmatpush.msra.mxu0 %v662
      %739 = vmatpush.msra.mxu0 %v648
      %740 = vmatpush.msra.mxu0 %v634
      %741 = vmatpush.msra.mxu0 %v620
      %742 = vmatpush.msra.mxu0 %v606
      %743 = vmatpush.msra.mxu0 %v592
      %744 = vmatpush.msra.mxu0 %v578
      %745 = vmatpush.msra.mxu0 %v562
      %746 = vmatmul.f32.gmra.mxu0 %v688
      %v747 = vpop.f32.mrf.mxu0
      %v748 = vadd.f32 %v685, %v747
      %749 = vdwg.mxu0
      %750 = vst [vmem:[%s301] sm:$0xff] %v708
      %751 = vst [vmem:[%s301 + $0x8] sm:$0xff] %v728
      %752 = vst [vmem:[%s301 + $0x10] sm:$0xff] %v748
      %s753 = smul.u32 3, %s24
      %p754 = scmp.lt.s32.totalorder %s23, 1
      %s755 = scalar_select %p754, %s23, 1
      %p756 = scmp.lt.s32.totalorder %s753, 2
      %s757 = scalar_select %p756, %s753, 2
      %s758 = smul.addr %s755, 3
      %s759 = sadd.s32 %s757, %s758
      %s760 = smul.addr %s759, 8
      %s761 = scalar_lea.vmem %s7, %s760
      // Predicated region
      $region49: #{encoding_block_end_forward.1} parent=47 // pred_check
        %p762 = pneg %p203
      $region50: #{encoding_block_end_forward.1} parent=47 // pred_check_branch
        %764 = sbr.rel (%p762) target = $region52
      $region51: #{encoding_block_end_forward.1} parent=47 // pred_region
        %s765 = smul.u32 3, %s24
      $region52: #{encoding_block_end_forward.1} parent=47 // pred_fallthru
        _
    $region48: #{encoding_block_end_forward.1} parent=5 // pred_fallthru
      _
    %p766 = scmp.le.s32.totalorder 2, %s14
    // Predicated region
    $region53: #{encoding_block_end_forward.1} parent=5 // pred_check
      %p767 = pneg %p766
    $region54: #{encoding_block_end_forward.1} parent=5 // pred_check_branch
      %769 = sbr.rel (%p767) target = $region56
    $region55: #{encoding_block_end_forward.1} parent=5 // pred_region
      %s770 = ssub.s32 %s14, 2
      // Predicated region
      $region57: #{encoding_block_end_forward.1} parent=55 // pred_check
        %p771 = pneg %p209
      $region58: #{encoding_block_end_forward.1} parent=55 // pred_check_branch
        %773 = sbr.rel (%p771) target = $region60
      $region59: #{encoding_block_end_forward.1} parent=55 // pred_region
        %s774 = smul.u32 3, %s26
        %p775 = scmp.lt.s32.totalorder %s25, 1
        %s776 = scalar_select %p775, %s25, 1
        %p777 = scmp.lt.s32.totalorder %s774, 2
        %s778 = scalar_select %p777, %s774, 2
        %s779 = smul.addr %s776, 3
        %s780 = sadd.s32 %s778, %s779
        %s781 = smul.addr %s780, 8
        %s782 = scalar_lea.vmem %s7, %s781
      $region60: #{encoding_block_end_forward.1} parent=55 // pred_fallthru
        _
    $region56: #{encoding_block_end_forward.1} parent=5 // pred_fallthru
      _
  $region6: #{encoding_block_end_forward.1} parent=0 // loop_footer
    %s18 = sadd.s32 1, %s14
  $region7: #{encoding_block_end_forward.1} parent=0 // loop_footer_branch
    %13 = sbr.rel target = $region3
  $region8: #{encoding_block_end_forward.1} parent=0 // loop_exit
    _

</llo_original>
